<compile_context>
chip_gen: v6e
topology: v6e:2x2x1
jax: 0.10.0
libtpu: 0.0.40
codegen_flags: <defaults>
</compile_context>

<pallas_src>
import math

import jax
import jax.numpy as jnp
from jax.experimental import pallas as pl
from jax.experimental.pallas import tpu as pltpu


# ---------------------------------------------------------------------------
# Hardware / tiling helpers
# ---------------------------------------------------------------------------

def _vmem_capacity_bytes():
    """Per-core VMEM capacity; conservative fallback is v7x's 64 MiB."""
    try:
        return int(pltpu.get_tpu_info().vmem_capacity_bytes)
    except Exception:
        return 64 << 20


def _pick_pack_factor(hw, c, lane=128, max_kc=1024):
    """Smallest power-of-two k with (k*c) % 128 == 0 and k | hw (else 1).

    Packing (HW, C) -> (HW/k, k*C) is a free contiguous view that makes the
    last (lane) dim a multiple of 128: unmasked full-width stores and wide
    contiguous DMA rows instead of C*itemsize-byte strided rows.
    """
    if c % lane == 0:
        return 1
    k = lane // math.gcd(c, lane)          # always a power of two
    if k > 1 and hw % k == 0 and k * c <= max_kc:
        return k
    return 1


def _pick_rows_tile(r, kc, itemsize, target_bytes=2 << 20):
    """Largest row tile dividing r, dtype-aligned, with block <= ~target_bytes."""
    align = max(8, 32 // itemsize)         # 8 rows f32, 16 bf16, 32 int8/fp8
    cap = max(align, ((target_bytes // (kc * itemsize)) // align) * align)
    t = min((r // align) * align, cap)
    while t >= align:
        if r % t == 0:
            return t
        t -= align
    # TODO(synk): pad ragged spatial extents (zeros are exact for sum-of-squares)
    # instead of falling back to the full extent, which can pressure VMEM.
    return r                               # full extent is always a legal block dim


# ---------------------------------------------------------------------------
# Kernels
# ---------------------------------------------------------------------------

def _make_fused_kernel(k, c):
    """Fused per-batch GRN: stats + modulation in one VMEM-resident pass."""
    kc = k * c

    def kernel(x_ref, gamma_ref, beta_ref, o_ref):
        # x_ref: (1, R, k*C); gamma/beta: (1, 1, k*C) f32
        x = x_ref[...].astype(jnp.float32)
        ss = jnp.sum(x * x, axis=1)                      # (1, k*C) per-lane partials
        if k > 1:
            # Fold the k lane-copies of each channel into the full spatial
            # sum-of-squares, replicated across every copy.  k is a power of
            # two and k*C a multiple of 128 by construction, so log2(k)
            # wrap-around lane rotations (XLU) suffice.
            shift = c
            while shift < kc:
                ss = ss + pltpu.roll(ss, shift, axis=1)
                shift *= 2
        gx = jnp.sqrt(ss)                                # (1, k*C): Gx_c replicated
        # Each channel appears exactly k times, so the lane mean == channel mean.
        mean = jnp.mean(gx, axis=-1, keepdims=True)
        nx = gx / (mean + 1e-6)
        scale = 1.0 + gamma_ref[...] * nx[:, None, :]    # (1, 1, k*C) f32
        o_ref[...] = (x * scale + beta_ref[...]).astype(o_ref.dtype)

    return kernel


def _ssq_kernel(x_ref, ssq_ref):
    # Spatial sum-of-squares reduction; output block is constant along the
    # reduction axis, so it stays resident (no extra VMEM scratch needed).
    @pl.when(pl.program_id(1) == 0)
    def _init():
        ssq_ref[...] = jnp.zeros_like(ssq_ref)

    x = x_ref[...].astype(jnp.float32)
    ssq_ref[...] += jnp.sum(x * x, axis=1, keepdims=True)


def _apply_kernel(x_ref, scale_ref, beta_ref, o_ref):
    # out = x * (1 + gamma*Nx) + beta, computed in f32, cast only at the store.
    x = x_ref[...].astype(jnp.float32)
    o_ref[...] = (x * scale_ref[...] + beta_ref[...]).astype(o_ref.dtype)


# ---------------------------------------------------------------------------
# Wrapper
# ---------------------------------------------------------------------------

def global_response_norm(x, gamma, beta):
    """x: (B, H, W, C) channels-last; gamma, beta broadcastable to (1,1,1,C)."""
    B, H, W, C = x.shape
    HW = H * W
    itemsize = jnp.dtype(x.dtype).itemsize

    k = _pick_pack_factor(HW, C)
    KC, R = k * C, HW // k

    x3 = x.reshape(B, R, KC)                                   # free contiguous view
    gamma_c = jnp.asarray(gamma, jnp.float32).reshape(C)
    beta_c = jnp.asarray(beta, jnp.float32).reshape(C)
    gamma_kc = jnp.tile(gamma_c, (k,)).reshape(1, 1, KC)
    beta_kc = jnp.tile(beta_c, (k,)).reshape(1, 1, KC)

    cap = _vmem_capacity_bytes()
    block_bytes = R * KC * itemsize
    # double-buffered in + out, an f32 working copy, params, slack
    fused_need = 4 * block_bytes + R * KC * 4 + 8 * KC * 4 + (1 << 20)
    use_fused = fused_need <= cap // 2

    if use_fused:
        vmem_limit = None
        if fused_need > (16 << 20):        # above the smallest (v5e) scoped default
            vmem_limit = int(min(cap - (2 << 20), fused_need + (4 << 20)))
        nelem = B * R * KC
        out3 = pl.pallas_call(
            _make_fused_kernel(k, C),
            out_shape=jax.ShapeDtypeStruct((B, R, KC), x.dtype),
            grid=(B,),
            in_specs=[
                pl.BlockSpec((1, R, KC), lambda b: (b, 0, 0)),
                pl.BlockSpec((1, 1, KC), lambda b: (0, 0, 0)),
                pl.BlockSpec((1, 1, KC), lambda b: (0, 0, 0)),
            ],
            out_specs=pl.BlockSpec((1, R, KC), lambda b: (b, 0, 0)),
            compiler_params=pltpu.CompilerParams(
                dimension_semantics=("parallel",),
                vmem_limit_bytes=vmem_limit),
            cost_estimate=pl.CostEstimate(
                flops=6 * nelem,
                transcendentals=B * KC,
                bytes_accessed=2 * nelem * itemsize),
        )(x3, gamma_kc, beta_kc)
    else:
        # -------- Two-pass fallback for slabs that do not fit VMEM ----------
        ts = _pick_rows_tile(R, KC, itemsize)
        n_sp = R // ts
        needed = 4 * ts * KC * itemsize + 8 * KC * 4 + (1 << 20)
        vmem_limit = None
        if needed > (16 << 20):
            vmem_limit = int(min(cap - (2 << 20), needed + (4 << 20)))

        # Pass 1: tiled spatial sum-of-squares reduction (lane-dense blocks).
        ssq = pl.pallas_call(
            _ssq_kernel,
            out_shape=jax.ShapeDtypeStruct((B, 1, KC), jnp.float32),
            grid=(B, n_sp),
            in_specs=[pl.BlockSpec((1, ts, KC), lambda b, s: (b, s, 0))],
            out_specs=pl.BlockSpec((1, 1, KC), lambda b, s: (b, 0, 0)),
            compiler_params=pltpu.CompilerParams(
                dimension_semantics=("parallel", "arbitrary"),
                vmem_limit_bytes=vmem_limit),
        )(x3)

        # Tiny per-(B, C) finalize in plain JAX (negligible traffic).
        ssq_c = ssq.reshape(B, k, C).sum(axis=1)               # (B, C)
        gx = jnp.sqrt(ssq_c)
        nx = gx / (jnp.mean(gx, axis=-1, keepdims=True) + 1e-6)
        scale_c = 1.0 + gamma_c[None, :] * nx                  # (B, C) f32
        scale_kc = jnp.tile(scale_c, (1, k)).reshape(B, 1, KC)

        # Pass 2: tiled elementwise modulation.
        out3 = pl.pallas_call(
            _apply_kernel,
            out_shape=jax.ShapeDtypeStruct((B, R, KC), x.dtype),
            grid=(B, n_sp),
            in_specs=[
                pl.BlockSpec((1, ts, KC), lambda b, s: (b, s, 0)),
                pl.BlockSpec((1, 1, KC), lambda b, s: (b, 0, 0)),
                pl.BlockSpec((1, 1, KC), lambda b, s: (0, 0, 0)),
            ],
            out_specs=pl.BlockSpec((1, ts, KC), lambda b, s: (b, s, 0)),
            compiler_params=pltpu.CompilerParams(
                dimension_semantics=("parallel", "parallel"),
                vmem_limit_bytes=vmem_limit),
        )(x3, scale_kc, beta_kc)

    return out3.reshape(B, H, W, C)


# ---------------------------------------------------------------------------
# Reference & test
# ---------------------------------------------------------------------------

def reference(x, gamma, beta):
    gx = jnp.sqrt(jnp.sum(x * x, axis=(1, 2), keepdims=True))
    nx = gx / (jnp.mean(gx, axis=-1, keepdims=True) + 1e-6)
    return gamma * (x * nx) + beta + x


if __name__ == "__main__":
    B, H, W, C = 2, 16, 16, 4

    key = jax.random.PRNGKey(0)
    kx, kg, kb = jax.random.split(key, 3)

    x = jax.random.normal(kx, (B, H, W, C), dtype=jnp.float32)
    # Module zero-initializes gamma/beta (which makes out == x); use non-zero
    # values here so the normalization path is actually exercised and checked.
    gamma = 0.1 * jax.random.normal(kg, (1, 1, 1, C), dtype=jnp.float32)
    beta = 0.1 * jax.random.normal(kb, (1, 1, 1, C), dtype=jnp.float32)

    out = global_response_norm(x, gamma, beta)
    out = jax.block_until_ready(out)

    ref = reference(x, gamma, beta)
    assert out.shape == (B, H, W, C)
    assert jnp.allclose(out, ref, atol=1e-5, rtol=1e-5), "mismatch vs reference"

    print("KERNEL_OK")
</pallas_src>

<mosaic_0001>
module attributes {stable_mosaic.version = 11 : i64} {
  func.func @kernel(%arg0: i32, %arg1: memref<1x8x128xf32, #tpu.memory_space<vmem>>, %arg2: memref<1x1x128xf32, #tpu.memory_space<vmem>>, %arg3: memref<1x1x128xf32, #tpu.memory_space<vmem>>, %arg4: memref<1x8x128xf32, #tpu.memory_space<vmem>>) attributes {dimension_semantics = [#tpu.dimension_semantics<parallel>], iteration_bounds = array<i64: 2>, scalar_prefetch = 0 : i64, scratch_operands = 0 : i64, tpu.core_type = #tpu.core_type<tc>, window_params = [{transform_indices = @transform_0, window_bounds = array<i64: 1, 8, 128>}, {pipeline_mode = #tpu.pipeline_mode<synchronous>, transform_indices = @transform_1, window_bounds = array<i64: 1, 1, 128>}, {pipeline_mode = #tpu.pipeline_mode<synchronous>, transform_indices = @transform_2, window_bounds = array<i64: 1, 1, 128>}, {transform_indices = @transform_3, window_bounds = array<i64: 1, 8, 128>}]} {
    %c0 = arith.constant 0 : index
    %c0_0 = arith.constant 0 : index
    %c0_1 = arith.constant 0 : index
    %0 = vector.load %arg1[%c0, %c0_0, %c0_1] : memref<1x8x128xf32, #tpu.memory_space<vmem>>, vector<1x8x128xf32>
    %1 = arith.mulf %0, %0 : vector<1x8x128xf32>
    %cst = arith.constant dense<0.000000e+00> : vector<1x128xf32>
    %2 = vector.multi_reduction <add>, %1, %cst [1] : vector<1x8x128xf32> to vector<1x128xf32>
    %c4_i32 = arith.constant 4 : i32
    %3 = tpu.dynamic_rotate %2 by %c4_i32 dim 1 : vector<1x128xf32>, i32 -> vector<1x128xf32>
    %4 = arith.addf %2, %3 : vector<1x128xf32>
    %c8_i32 = arith.constant 8 : i32
    %5 = tpu.dynamic_rotate %4 by %c8_i32 dim 1 : vector<1x128xf32>, i32 -> vector<1x128xf32>
    %6 = arith.addf %4, %5 : vector<1x128xf32>
    %c16_i32 = arith.constant 16 : i32
    %7 = tpu.dynamic_rotate %6 by %c16_i32 dim 1 : vector<1x128xf32>, i32 -> vector<1x128xf32>
    %8 = arith.addf %6, %7 : vector<1x128xf32>
    %c32_i32 = arith.constant 32 : i32
    %9 = tpu.dynamic_rotate %8 by %c32_i32 dim 1 : vector<1x128xf32>, i32 -> vector<1x128xf32>
    %10 = arith.addf %8, %9 : vector<1x128xf32>
    %c64_i32 = arith.constant 64 : i32
    %11 = tpu.dynamic_rotate %10 by %c64_i32 dim 1 : vector<1x128xf32>, i32 -> vector<1x128xf32>
    %12 = arith.addf %10, %11 : vector<1x128xf32>
    %13 = math.sqrt %12 : vector<1x128xf32>
    %cst_2 = arith.constant dense<0.000000e+00> : vector<1xf32>
    %14 = vector.multi_reduction <add>, %13, %cst_2 [1] : vector<1x128xf32> to vector<1xf32>
    %15 = vector.shape_cast %14 : vector<1xf32> to vector<1x1xf32>
    %cst_3 = arith.constant 1.280000e+02 : f32
    %16 = vector.broadcast %cst_3 : f32 to vector<1x1xf32>
    %17 = arith.divf %15, %16 : vector<1x1xf32>
    %cst_4 = arith.constant 9.99999997E-7 : f32
    %18 = vector.broadcast %cst_4 : f32 to vector<1x1xf32>
    %19 = arith.addf %17, %18 : vector<1x1xf32>
    %20 = vector.broadcast %19 : vector<1x1xf32> to vector<1x128xf32>
    %21 = arith.divf %13, %20 : vector<1x128xf32>
    %c0_5 = arith.constant 0 : index
    %c0_6 = arith.constant 0 : index
    %c0_7 = arith.constant 0 : index
    %22 = vector.load %arg2[%c0_5, %c0_6, %c0_7] : memref<1x1x128xf32, #tpu.memory_space<vmem>>, vector<1x1x128xf32>
    %23 = vector.shape_cast %21 : vector<1x128xf32> to vector<1x1x128xf32>
    %24 = arith.mulf %22, %23 : vector<1x1x128xf32>
    %cst_8 = arith.constant 1.000000e+00 : f32
    %25 = vector.broadcast %cst_8 : f32 to vector<1x1x128xf32>
    %26 = arith.addf %25, %24 : vector<1x1x128xf32>
    %27 = vector.broadcast %26 : vector<1x1x128xf32> to vector<1x8x128xf32>
    %28 = arith.mulf %0, %27 : vector<1x8x128xf32>
    %c0_9 = arith.constant 0 : index
    %c0_10 = arith.constant 0 : index
    %c0_11 = arith.constant 0 : index
    %29 = vector.load %arg3[%c0_9, %c0_10, %c0_11] : memref<1x1x128xf32, #tpu.memory_space<vmem>>, vector<1x1x128xf32>
    %30 = vector.broadcast %29 : vector<1x1x128xf32> to vector<1x8x128xf32>
    %31 = arith.addf %28, %30 : vector<1x8x128xf32>
    %c0_12 = arith.constant 0 : index
    %c0_13 = arith.constant 0 : index
    %c0_14 = arith.constant 0 : index
    %32 = vector.load %arg4[%c0_12, %c0_13, %c0_14] : memref<1x8x128xf32, #tpu.memory_space<vmem>>, vector<1x8x128xf32>
    tpu.vector_store %arg4[%c0_12, %c0_13, %c0_14], %31 {strides = array<i32>} : memref<1x8x128xf32, #tpu.memory_space<vmem>>, vector<1x8x128xf32>,
    return
  }
  func.func @transform_0(%arg0: i32) -> (i32, i32, i32) {
    %c0_i32 = arith.constant 0 : i32
    %c0_i32_0 = arith.constant 0 : i32
    %c0_i32_1 = arith.constant 0 : i32
    return %arg0, %c0_i32, %c0_i32_0 : i32, i32, i32
  }
  func.func @transform_1(%arg0: i32) -> (i32, i32, i32) {
    %c0_i32 = arith.constant 0 : i32
    %c0_i32_0 = arith.constant 0 : i32
    %c0_i32_1 = arith.constant 0 : i32
    %c0_i32_2 = arith.constant 0 : i32
    return %c0_i32, %c0_i32_0, %c0_i32_1 : i32, i32, i32
  }
  func.func @transform_2(%arg0: i32) -> (i32, i32, i32) {
    %c0_i32 = arith.constant 0 : i32
    %c0_i32_0 = arith.constant 0 : i32
    %c0_i32_1 = arith.constant 0 : i32
    %c0_i32_2 = arith.constant 0 : i32
    return %c0_i32, %c0_i32_0, %c0_i32_1 : i32, i32, i32
  }
  func.func @transform_3(%arg0: i32) -> (i32, i32, i32) {
    %c0_i32 = arith.constant 0 : i32
    %c0_i32_0 = arith.constant 0 : i32
    %c0_i32_1 = arith.constant 0 : i32
    return %arg0, %c0_i32, %c0_i32_0 : i32, i32, i32
  }
}

</mosaic_0001>

<llo_original>
// kernel: tpu_custom_call.1
$region0: #{tpu_custom_call.1}
  #allocation0 [shape = 'u32[]', space=smem, size = 0x4, offset = 0x4, fixed_abs, tag = 'smem constant byte address 0x4 - core index']
  #allocation1 [shape = 'u32[144,128]{1,0:T(1,128)}', space=vmem, size = 0x12000, scoped, tag = 'internal scratch']
  %s0 = inlined_call_operand.hbm [shape: f32[2,8,128], index: 0, kind: input, shape index: {}]
  %s1 = inlined_call_operand.vmem [shape: f32[1,1,128], index: 1, kind: input, shape index: {}]
  %s2 = inlined_call_operand.vmem [shape: f32[1,1,128], index: 2, kind: input, shape index: {}]
  %s3 = inlined_call_operand.hbm [shape: f32[2,8,128], index: 3, kind: output, shape index: {}]
  %s4 = sld [smem:[#allocation0]]
  $region49: #{tpu_custom_call.1} parent=0
    _
  %s6 = ssub.s32 1, %s4
  %s7 = scalar_select 0, %s6, %s4
  $region1: #{tpu_custom_call.1} parent=0
    #allocation2 [shape = 'u8[8192]{0}', space=vmem, size = 0x2000, scoped, tag = 'input window, operand 0']
    #allocation3 [shape = 's32[2]{0}', space=sflag, size = 0x8, scoped, tag = 'scoped memory for tpu_custom_call.1']
    #allocation4 [shape = 's32[2]{0}', space=sflag, size = 0x8, scoped, tag = 'scoped memory for tpu_custom_call.1']
    #allocation5 [shape = 'u8[8192]{0}', space=vmem, size = 0x2000, scoped, tag = 'output window, operand 0']
    %8 = vsyncpa [#allocation3], 0
    %s9 = scalar_lea.sflag [#allocation3], 1
    %10 = vsyncpa %s9, 0
    %11 = vsyncpa [#allocation4], 0
    %s12 = scalar_lea.sflag [#allocation4], 1
    %13 = vsyncpa %s12, 0
    loop: start=0, step=1, limit=4
    $region2: #{tpu_custom_call.1} parent=1 // loop_pre_header
      _
    $region3: #{tpu_custom_call.1} parent=1 // loop_header
      %s15 = sphi 0, %s19
      %p16 = scmp.ge.s32.totalorder %s15, 4
      %s25 = sphi 0, %s27
      %s28 = sphi 0, %s25
      %s29 = sphi 0, %s28
      %s45 = sphi 0, %s29
      %s49 = sphi 0, %s49
      %s51 = sphi 0, %s49
      %s52 = sphi 0, %s51
      %s66 = sphi 0, %s52
      %s70 = sphi 0, %s70
      %s72 = sphi 0, %s70
      %s73 = sphi 0, %s72
      %s87 = sphi 0, %s73
      %s93 = sphi 0, %s95
      %s96 = sphi 0, %s93
      %s97 = sphi 0, %s96
      %s113 = sphi 0, %s97
    $region4: #{tpu_custom_call.1} parent=1 // loop_header_branch
      %18 = sbr.rel (%p16) target = $region8
    $region5: #{tpu_custom_call.1} parent=1 // loop_body
      %s20 = ssub.s32 %s15, 1
      %s21 = ssub.s32 %s15, 2
      %s22 = sadd.s32 %s15, 1
      %s23 = ssub.s32 %s15, %s22
      %p24 = scmp.eq.s32.totalorder %s23, 0
      %s26 = sadd.s32 %s25, 1
      %s27 = scalar_select %p24, %s25, %s26
      %p30 = pneg %p24
      %p31 = scmp.eq.s32.totalorder %s15, 1
      %p32 = por %p30, %p31
      %p33 = scmp.ne.s32.totalorder %s25, %s28
      %p34 = scmp.eq.s32.totalorder %s15, 0
      %p35 = por %p33, %p34
      %p36 = scmp.ne.s32.totalorder %s25, %s28
      %p37 = scmp.eq.s32.totalorder %s20, 1
      %p38 = por %p36, %p37
      %p39 = scmp.ne.s32.totalorder %s28, %s29
      %p40 = scmp.eq.s32.totalorder %s20, 0
      %p41 = por %p39, %p40
      %p42 = scmp.ne.s32.totalorder %s28, %s29
      %p43 = scmp.eq.s32.totalorder %s21, 1
      %p44 = por %p42, %p43
      %p46 = scmp.ne.s32.totalorder %s29, %s45
      %p47 = scmp.eq.s32.totalorder %s21, 0
      %p48 = por %p46, %p47
      %s50 = sadd.s32 %s49, 1
      %p53 = scmp.eq.s32.totalorder %s15, 1
      %p54 = scmp.ne.s32.totalorder %s49, %s51
      %p55 = scmp.eq.s32.totalorder %s15, 0
      %p56 = por %p54, %p55
      %p57 = scmp.ne.s32.totalorder %s49, %s51
      %p58 = scmp.eq.s32.totalorder %s20, 1
      %p59 = por %p57, %p58
      %p60 = scmp.ne.s32.totalorder %s51, %s52
      %p61 = scmp.eq.s32.totalorder %s20, 0
      %p62 = por %p60, %p61
      %p63 = scmp.ne.s32.totalorder %s51, %s52
      %p64 = scmp.eq.s32.totalorder %s21, 1
      %p65 = por %p63, %p64
      %p67 = scmp.ne.s32.totalorder %s52, %s66
      %p68 = scmp.eq.s32.totalorder %s21, 0
      %p69 = por %p67, %p68
      %s71 = sadd.s32 %s70, 1
      %p74 = scmp.eq.s32.totalorder %s15, 1
      %p75 = scmp.ne.s32.totalorder %s70, %s72
      %p76 = scmp.eq.s32.totalorder %s15, 0
      %p77 = por %p75, %p76
      %p78 = scmp.ne.s32.totalorder %s70, %s72
      %p79 = scmp.eq.s32.totalorder %s20, 1
      %p80 = por %p78, %p79
      %p81 = scmp.ne.s32.totalorder %s72, %s73
      %p82 = scmp.eq.s32.totalorder %s20, 0
      %p83 = por %p81, %p82
      %p84 = scmp.ne.s32.totalorder %s72, %s73
      %p85 = scmp.eq.s32.totalorder %s21, 1
      %p86 = por %p84, %p85
      %p88 = scmp.ne.s32.totalorder %s73, %s87
      %p89 = scmp.eq.s32.totalorder %s21, 0
      %p90 = por %p88, %p89
      %s91 = ssub.s32 %s15, %s22
      %p92 = scmp.eq.s32.totalorder %s91, 0
      %s94 = sadd.s32 %s93, 1
      %s95 = scalar_select %p92, %s93, %s94
      %p98 = pneg %p92
      %p99 = scmp.eq.s32.totalorder %s15, 1
      %p100 = por %p98, %p99
      %p101 = scmp.ne.s32.totalorder %s93, %s96
      %p102 = scmp.eq.s32.totalorder %s15, 0
      %p103 = por %p101, %p102
      %p104 = scmp.ne.s32.totalorder %s93, %s96
      %p105 = scmp.eq.s32.totalorder %s20, 1
      %p106 = por %p104, %p105
      %p107 = scmp.ne.s32.totalorder %s96, %s97
      %p108 = scmp.eq.s32.totalorder %s20, 0
      %p109 = por %p107, %p108
      %p110 = scmp.ne.s32.totalorder %s96, %s97
      %p111 = scmp.eq.s32.totalorder %s21, 1
      %p112 = por %p110, %p111
      %p114 = scmp.ne.s32.totalorder %s97, %s113
      %p115 = scmp.eq.s32.totalorder %s21, 0
      %p116 = por %p114, %p115
      %p117 = scmp.le.s32.totalorder 1, %s15
      %p118 = scmp.lt.s32.totalorder %s15, 3
      %p119 = pnand %p117, %p118
      %p120 = pneg %p119
      // Predicated region
      $region9: #{tpu_custom_call.1} parent=5 // pred_check
        _
      $region10: #{tpu_custom_call.1} parent=5 // pred_check_branch
        %122 = sbr.rel (%p119) target = $region12
      $region11: #{tpu_custom_call.1} parent=5 // pred_region
        %s123 = ssub.s32 %s15, 1
        // Predicated region
        $region13: #{tpu_custom_call.1} parent=11 // pred_check
          %p124 = pneg %p62
        $region14: #{tpu_custom_call.1} parent=11 // pred_check_branch
          %126 = sbr.rel (%p124) target = $region16
        $region15: #{tpu_custom_call.1} parent=11 // pred_region
          _
        $region16: #{tpu_custom_call.1} parent=11 // pred_fallthru
          _
        // Predicated region
        $region17: #{tpu_custom_call.1} parent=11 // pred_check
          %p127 = pneg %p83
        $region18: #{tpu_custom_call.1} parent=11 // pred_check_branch
          %129 = sbr.rel (%p127) target = $region20
        $region19: #{tpu_custom_call.1} parent=11 // pred_region
          _
        $region20: #{tpu_custom_call.1} parent=11 // pred_fallthru
          _
      $region12: #{tpu_custom_call.1} parent=5 // pred_fallthru
        _
      %p130 = scmp.lt.s32.totalorder %s15, 2
      // Predicated region
      $region21: #{tpu_custom_call.1} parent=5 // pred_check
        %p131 = pneg %p130
      $region22: #{tpu_custom_call.1} parent=5 // pred_check_branch
        %133 = sbr.rel (%p131) target = $region24
      $region23: #{tpu_custom_call.1} parent=5 // pred_region
        // Predicated region
        $region25: #{tpu_custom_call.1} parent=23 // pred_check
          %p134 = pneg %p35
        $region26: #{tpu_custom_call.1} parent=23 // pred_check_branch
          %136 = sbr.rel (%p134) target = $region28
        $region27: #{tpu_custom_call.1} parent=23 // pred_region
          %s137 = sand.u32 %s25, 1
          %s138 = scalar_lea.sflag [#allocation3], %s137
          %s139 = sand.u32 %s25, 1
          %s140 = smul.addr %s139, 8
          %s141 = scalar_lea.vmem [#allocation2], %s140
          %s143 = ssub.s32 128, 128
          %144 = vsyncadd %s138, %s143
          %s145 = smul.addr %s15, 128
          %s146 = scalar_lea.hbm %s0, %s145
          %s148 = sshll.u32 %s141, 4
          %s149 = int_to_ptr.vmem [resolvable:$true] %s148
          %151 = dma.hbm_to_vmem [thread:$0]  %s146, 128, %s149, %s138
        $region28: #{tpu_custom_call.1} parent=23 // pred_fallthru
          _
      $region24: #{tpu_custom_call.1} parent=5 // pred_fallthru
        _
      %p152 = scmp.le.s32.totalorder 1, %s15
      %p153 = scmp.lt.s32.totalorder %s15, 3
      %p154 = pnand %p152, %p153
      %p155 = pneg %p154
      // Predicated region
      $region29: #{tpu_custom_call.1} parent=5 // pred_check
        _
      $region30: #{tpu_custom_call.1} parent=5 // pred_check_branch
        %157 = sbr.rel (%p154) target = $region32
      $region31: #{tpu_custom_call.1} parent=5 // pred_region
        %s158 = ssub.s32 %s15, 1
        %s159 = sand.u32 %s28, 1
        %s160 = scalar_lea.sflag [#allocation3], %s159
        %s161 = sand.u32 %s28, 1
        %s162 = smul.addr %s161, 8
        %s163 = scalar_lea.vmem [#allocation2], %s162
        // Predicated region
        $region33: #{tpu_custom_call.1} parent=31 // pred_check
          %p164 = pneg %p41
        $region34: #{tpu_custom_call.1} parent=31 // pred_check_branch
          %166 = sbr.rel (%p164) target = $region36
        $region35: #{tpu_custom_call.1} parent=31 // pred_region
          %167 = dma.done %s160, 128
        $region36: #{tpu_custom_call.1} parent=31 // pred_fallthru
          _
        %s168 = sand.u32 %s28, 1
        %s169 = scalar_lea.sflag [#allocation3], %s168
        %s170 = sand.u32 %s28, 1
        %s171 = smul.addr %s170, 8
        %s172 = scalar_lea.vmem [#allocation2], %s171
        %p173 = pneg %p41
        %p174 = pneg %p38
        %p175 = pneg %p62
        %p176 = pneg %p59
        %p177 = pneg %p83
        %p178 = pneg %p80
        %p179 = pneg %p109
        %p180 = pneg %p106
        %s181 = sand.u32 %s96, 1
        %s182 = scalar_lea.sflag [#allocation4], %s181
        %s183 = sand.u32 %s96, 1
        %s184 = smul.addr %s183, 8
        %s185 = scalar_lea.vmem [#allocation5], %s184
        %v186 = vld [vmem:[%s163] sm:$0xff]
        %v187 = vmul.f32 %v186, %v186
        %v188 = vrot.slane %v187, 4
        %v189 = vadd.f32 %v187, %v188
        %v190 = vrot.slane %v189, 2
        %v191 = vadd.f32 %v189, %v190
        %v192 = vrot.slane %v191, 1
        %v193 = vadd.f32 %v191, %v192
        %194 = vrot.lane.b32.xlu0 %v193, 4
        %v195 = vpop.permute.xlu0 %194
        %v196 = vadd.f32 %v193, %v195
        %197 = vrot.lane.b32.xlu0 %v196, 8
        %v198 = vpop.permute.xlu0 %197
        %v199 = vadd.f32 %v196, %v198
        %200 = vrot.lane.b32.xlu0 %v199, 16
        %v201 = vpop.permute.xlu0 %200
        %v202 = vadd.f32 %v199, %v201
        %203 = vrot.lane.b32.xlu0 %v202, 32
        %v204 = vpop.permute.xlu0 %203
        %v205 = vadd.f32 %v202, %v204
        %206 = vrot.lane.b32.xlu0 %v205, 64
        %v207 = vpop.permute.xlu0 %206
        %v208 = vadd.f32 %v205, %v207
        %v209 = vrsqrt.pop %v208
        %v210 = vmul.f32 %v208, %v209
        %vm211 = vcmp.eq.f32.partialorder %v208, inf
        %v212 = vsel %vm211, %v208, %v210
        %vm213 = vcmp.eq.f32.partialorder %v208, 0.0
        %v214 = vand.u32 %v208, 2147483648
        %v215 = vsel %vm213, %v214, %v212
        %vm216 = vcmask 1040384
        %v217 = vsel %vm216, %v215, 0.0
        %218 = vadd.xlane.f32.xlu0 %v217
        %v219 = vpop.xlane.xlu0 %218
        %v220 = vrcp.pop 128.0
        %v221 = vmul.f32 %v219, %v220
        %v222 = vadd.f32 %v221, 1e-06
        %v223 = vrcp.pop %v222
        %v224 = vmul.f32 %v215, %v223
        %v225 = vld [vmem:[%s1] sm:$0x1]
        %v226 = vmul.f32 %v225, %v224
        %v227 = vadd.f32 %v226, 1.0
        %v229 = vlaneseq
        %v230 = vshrl.u32 %v229, 7
        %v231 = vsub.s32 0, %v230
        %v232 = vrot.slane %v227, %v231
        %v234 = vmul.f32 %v186, %v232
        %v235 = vld [vmem:[%s2] sm:$0x1]
        %v237 = vlaneseq
        %v238 = vshrl.u32 %v237, 7
        %v239 = vsub.s32 0, %v238
        %v240 = vrot.slane %v235, %v239
        %v242 = vadd.f32 %v234, %v240
        %243 = vst [vmem:[%s185] sm:$0xff] %v242
        %s244 = sand.u32 %s96, 1
        %s245 = scalar_lea.sflag [#allocation4], %s244
        %s246 = sand.u32 %s96, 1
        %s247 = smul.addr %s246, 8
        %s248 = scalar_lea.vmem [#allocation5], %s247
        // Predicated region
        $region37: #{tpu_custom_call.1} parent=31 // pred_check
          %p249 = pneg %p106
        $region38: #{tpu_custom_call.1} parent=31 // pred_check_branch
          %251 = sbr.rel (%p249) target = $region40
        $region39: #{tpu_custom_call.1} parent=31 // pred_region
          %s253 = ssub.s32 128, 128
          %254 = vsyncadd %s245, %s253
          %s255 = smul.addr %s20, 128
          %s256 = scalar_lea.hbm %s3, %s255
          %s258 = sshll.u32 %s248, 4
          %s259 = int_to_ptr.vmem [resolvable:$true] %s258
          %261 = dma.vmem_to_hbm [thread:$0]  %s259, 128, %s256, %s245
        $region40: #{tpu_custom_call.1} parent=31 // pred_fallthru
          _
      $region32: #{tpu_custom_call.1} parent=5 // pred_fallthru
        _
      %p262 = scmp.le.s32.totalorder 2, %s15
      // Predicated region
      $region41: #{tpu_custom_call.1} parent=5 // pred_check
        %p263 = pneg %p262
      $region42: #{tpu_custom_call.1} parent=5 // pred_check_branch
        %265 = sbr.rel (%p263) target = $region44
      $region43: #{tpu_custom_call.1} parent=5 // pred_region
        %s266 = ssub.s32 %s15, 2
        // Predicated region
        $region45: #{tpu_custom_call.1} parent=43 // pred_check
          %p267 = pneg %p112
        $region46: #{tpu_custom_call.1} parent=43 // pred_check_branch
          %269 = sbr.rel (%p267) target = $region48
        $region47: #{tpu_custom_call.1} parent=43 // pred_region
          %s270 = sand.u32 %s97, 1
          %s271 = scalar_lea.sflag [#allocation4], %s270
          %s272 = sand.u32 %s97, 1
          %s273 = smul.addr %s272, 8
          %s274 = scalar_lea.vmem [#allocation5], %s273
          %275 = dma.done %s271, 128
        $region48: #{tpu_custom_call.1} parent=43 // pred_fallthru
          _
      $region44: #{tpu_custom_call.1} parent=5 // pred_fallthru
        _
    $region6: #{tpu_custom_call.1} parent=1 // loop_footer
      %s19 = sadd.s32 1, %s15
    $region7: #{tpu_custom_call.1} parent=1 // loop_footer_branch
      %14 = sbr.rel target = $region3
    $region8: #{tpu_custom_call.1} parent=1 // loop_exit
      _
    %276 = vsyncpa [#allocation3], 1
    %s277 = scalar_lea.sflag [#allocation3], 1
    %278 = vsyncpa %s277, 1
    %279 = vsyncpa [#allocation4], 1
    %s280 = scalar_lea.sflag [#allocation4], 1
    %281 = vsyncpa %s280, 1

</llo_original>
